<compile_context>
chip_gen: v5e
topology: v5e:2x2
jax: 0.10.0
libtpu: 0.0.40
codegen_flags: <defaults>
</compile_context>

<pallas_src>
import jax
import jax.numpy as jnp
from jax import lax
from jax.experimental import pallas as pl
from jax.experimental.pallas import tpu as pltpu


def lstm_kernel(x_ref, wih_ref, b_ref, whh_ref, wlin_ref, blin_ref,
                out_ref, xproj_ref):
    """Single invocation: full sequence in VMEM, statically unrolled recurrence."""
    seq_len = x_ref.shape[0]
    four_h = b_ref.shape[1]
    H = four_h // 4

    # Hoisted (non-recurrent) input projection for ALL timesteps: one
    # (S, I) @ (I, 4H) MXU call + combined bias, staged in VMEM scratch.
    xproj_ref[...] = (
        jnp.dot(x_ref[...], wih_ref[...], preferred_element_type=jnp.float32)
        + b_ref[...])                                        # (S, 4H)

    whh = whh_ref[...]           # (H, 4H) -- unpadded, K = H on the MXU

    # sigmoid(x) = 0.5 * tanh(x / 2) + 0.5  -> single tanh pass for all gates.
    # Only the g block (lanes [2H, 3H)) is a true tanh.
    lane = lax.broadcasted_iota(jnp.int32, (1, four_h), 1)
    is_g = (lane >= 2 * H) & (lane < 3 * H)
    scale = jnp.where(is_g, 1.0, 0.5).astype(jnp.float32)    # pre & post scale
    shift = jnp.where(is_g, 0.0, 0.5).astype(jnp.float32)    # post shift

    # Narrow (1, H) state: feeds the K=32 recurrent matmul directly.
    h = jnp.zeros((1, H), jnp.float32)
    c = jnp.zeros((1, H), jnp.float32)

    # seq_len is static -> fully unrolled at trace time (LLO sees all steps).
    for t in range(seq_len):
        # Only this (1,H)@(H,4H) matmul sits on the serial critical path.
        gates = xproj_ref[t:t + 1, :] + jnp.dot(
            h, whh, preferred_element_type=jnp.float32)      # (1, 4H)
        # One full-width EUP pass for all four gate activations.
        act = scale * jnp.tanh(gates * scale) + shift        # [σ(i),σ(f),tanh(g),σ(o)]
        i_g = act[:, 0:H]              # zero-offset slice (free)
        f_g = act[:, H:2 * H]          # lane-offset slices -> XLU rotates
        g_g = act[:, 2 * H:3 * H]
        o_g = act[:, 3 * H:4 * H]
        c = f_g * c + i_g * g_g
        h = o_g * jnp.tanh(c)

    # Folded nn.Linear: (1,H)@(H,OUT_PAD) + bias -> single lane-dense store.
    out_ref[...] = (
        jnp.dot(h, wlin_ref[...], preferred_element_type=jnp.float32)
        + blin_ref[...])


def prepare_lstm_params(w_ih, w_hh, b_ih, b_hh, w_lin, b_lin, out_pad=128):
    """One-time weight preprocessing (kept OUT of the per-call jitted path).

    PyTorch layouts in:  w_ih (4H, I), w_hh (4H, H), b_ih/b_hh (4H,),
                         w_lin (O, H), b_lin (O,)
    """
    four_h = w_ih.shape[0]
    H = four_h // 4
    O = w_lin.shape[0]
    assert O <= out_pad

    wih_t = jnp.asarray(w_ih, jnp.float32).T                           # (I, 4H)
    b = (jnp.asarray(b_ih, jnp.float32)
         + jnp.asarray(b_hh, jnp.float32)).reshape(1, four_h)          # (1, 4H)
    whh_t = jnp.asarray(w_hh, jnp.float32).T                           # (H, 4H)
    wlin_pad = jnp.zeros((H, out_pad), jnp.float32)
    wlin_pad = wlin_pad.at[:, :O].set(jnp.asarray(w_lin, jnp.float32).T)
    blin_pad = jnp.zeros((1, out_pad), jnp.float32)
    blin_pad = blin_pad.at[0, :O].set(jnp.asarray(b_lin, jnp.float32))
    return wih_t, b, whh_t, wlin_pad, blin_pad


@jax.jit
def lstm_forward(x, wih_t, b, whh_t, wlin_pad, blin_pad):
    """Pallas forward matching LSTMModel.forward; returns predictions[:, 0]."""
    seq_len, _ = x.shape
    four_h = b.shape[1]
    out_pad = wlin_pad.shape[1]

    pred_pad = pl.pallas_call(
        lstm_kernel,
        out_shape=jax.ShapeDtypeStruct((1, out_pad), jnp.float32),
        scratch_shapes=[pltpu.VMEM((seq_len, four_h), jnp.float32)],
    )(x.astype(jnp.float32), wih_t, b, whh_t, wlin_pad, blin_pad)

    return pred_pad[:, 0]                                              # (1,)


def lstm_model_reference(x, w_ih, w_hh, b_ih, b_hh, w_lin, b_lin):
    """Pure-JAX reference for correctness checking (PyTorch semantics)."""
    H = w_hh.shape[1]

    def step(carry, x_t):
        h, c = carry
        gates = x_t @ w_ih.T + b_ih + h @ w_hh.T + b_hh
        i = jax.nn.sigmoid(gates[0:H])
        f = jax.nn.sigmoid(gates[H:2 * H])
        g = jnp.tanh(gates[2 * H:3 * H])
        o = jax.nn.sigmoid(gates[3 * H:4 * H])
        c = f * c + i * g
        h = o * jnp.tanh(c)
        return (h, c), h

    (h, _), _ = lax.scan(step, (jnp.zeros((H,)), jnp.zeros((H,))), x)
    pred = h @ w_lin.T + b_lin
    return pred[0:1]


if __name__ == "__main__":
    SEQ, INPUT, HIDDEN, OUTPUT = 8, 16, 32, 4

    key = jax.random.PRNGKey(0)
    ks = jax.random.split(key, 7)
    scale = 1.0 / jnp.sqrt(HIDDEN)

    # Deterministic synthetic params (PyTorch nn.LSTM / nn.Linear shapes).
    w_ih = jax.random.uniform(ks[0], (4 * HIDDEN, INPUT), minval=-scale, maxval=scale)
    w_hh = jax.random.uniform(ks[1], (4 * HIDDEN, HIDDEN), minval=-scale, maxval=scale)
    b_ih = jax.random.uniform(ks[2], (4 * HIDDEN,), minval=-scale, maxval=scale)
    b_hh = jax.random.uniform(ks[3], (4 * HIDDEN,), minval=-scale, maxval=scale)
    w_lin = jax.random.uniform(ks[4], (OUTPUT, HIDDEN), minval=-scale, maxval=scale)
    b_lin = jax.random.uniform(ks[5], (OUTPUT,), minval=-scale, maxval=scale)

    x = jax.random.normal(ks[6], (SEQ, INPUT), dtype=jnp.float32)

    # Weight prep once, outside the per-call jitted path.
    packed = prepare_lstm_params(w_ih, w_hh, b_ih, b_hh, w_lin, b_lin)
    packed = jax.block_until_ready(packed)

    out = lstm_forward(x, *packed)
    out = jax.block_until_ready(out)

    ref = lstm_model_reference(x, w_ih, w_hh, b_ih, b_hh, w_lin, b_lin)
    assert out.shape == (1,), out.shape
    # 1e-4 tolerance: f32 everywhere, but sigmoid-via-tanh + MXU f32 passes
    # differ slightly from the XLA reference's logistic-sigmoid path.
    assert jnp.allclose(out, ref, atol=1e-4, rtol=1e-4), (out, ref)

    print("KERNEL_OK")
</pallas_src>

<mosaic_0001>
module attributes {stable_mosaic.version = 11 : i64} {
  func.func @lstm_kernel(%arg0: memref<8x16xf32, #tpu.memory_space<vmem>>, %arg1: memref<16x128xf32, #tpu.memory_space<vmem>>, %arg2: memref<1x128xf32, #tpu.memory_space<vmem>>, %arg3: memref<32x128xf32, #tpu.memory_space<vmem>>, %arg4: memref<32x128xf32, #tpu.memory_space<vmem>>, %arg5: memref<1x128xf32, #tpu.memory_space<vmem>>, %arg6: memref<1x128xf32, #tpu.memory_space<vmem>>, %arg7: memref<8x128xf32, #tpu.memory_space<vmem>>) attributes {dimension_semantics = [], scalar_prefetch = 0 : i64, scratch_operands = 1 : i64, tpu.core_type = #tpu.core_type<tc>} {
    %c0 = arith.constant 0 : index
    %c0_0 = arith.constant 0 : index
    %0 = vector.load %arg0[%c0, %c0_0] : memref<8x16xf32, #tpu.memory_space<vmem>>, vector<8x16xf32>
    %c0_1 = arith.constant 0 : index
    %c0_2 = arith.constant 0 : index
    %1 = vector.load %arg1[%c0_1, %c0_2] : memref<16x128xf32, #tpu.memory_space<vmem>>, vector<16x128xf32>
    %cst = arith.constant dense<0.000000e+00> : vector<8x128xf32>
    %2 = tpu.matmul %0, %1, %cst {dimension_numbers = #tpu.dot_dimension_numbers<[1], [0], [0], [1], [0, 0, 1, 1], [], []>} : vector<8x16xf32>, vector<16x128xf32>, vector<8x128xf32> -> vector<8x128xf32>
    %c0_3 = arith.constant 0 : index
    %c0_4 = arith.constant 0 : index
    %3 = vector.load %arg2[%c0_3, %c0_4] : memref<1x128xf32, #tpu.memory_space<vmem>>, vector<1x128xf32>
    %4 = vector.broadcast %3 : vector<1x128xf32> to vector<8x128xf32>
    %5 = arith.addf %2, %4 : vector<8x128xf32>
    %c0_5 = arith.constant 0 : index
    %c0_6 = arith.constant 0 : index
    %6 = vector.load %arg7[%c0_5, %c0_6] : memref<8x128xf32, #tpu.memory_space<vmem>>, vector<8x128xf32>
    tpu.vector_store %arg7[%c0_5, %c0_6], %5 {strides = array<i32>} : memref<8x128xf32, #tpu.memory_space<vmem>>, vector<8x128xf32>,
    %c0_7 = arith.constant 0 : index
    %c0_8 = arith.constant 0 : index
    %7 = vector.load %arg3[%c0_7, %c0_8] : memref<32x128xf32, #tpu.memory_space<vmem>>, vector<32x128xf32>
    %8 = tpu.iota {dimensions = array<i32: 1>} : vector<1x128xi32>
    %c64_i32 = arith.constant 64 : i32
    %9 = vector.broadcast %c64_i32 : i32 to vector<1x128xi32>
    %10 = arith.cmpi sge, %8, %9 : vector<1x128xi32>
    %c96_i32 = arith.constant 96 : i32
    %11 = vector.broadcast %c96_i32 : i32 to vector<1x128xi32>
    %12 = arith.cmpi slt, %8, %11 : vector<1x128xi32>
    %13 = arith.andi %10, %12 : vector<1x128xi1>
    %cst_9 = arith.constant 1.000000e+00 : f32
    %cst_10 = arith.constant 5.000000e-01 : f32
    %14 = vector.broadcast %cst_9 : f32 to vector<1x128xf32>
    %15 = vector.broadcast %cst_10 : f32 to vector<1x128xf32>
    %16 = arith.select %13, %14, %15 : vector<1x128xi1>, vector<1x128xf32>
    %cst_11 = arith.constant 0.000000e+00 : f32
    %cst_12 = arith.constant 5.000000e-01 : f32
    %17 = vector.broadcast %cst_11 : f32 to vector<1x128xf32>
    %18 = vector.broadcast %cst_12 : f32 to vector<1x128xf32>
    %19 = arith.select %13, %17, %18 : vector<1x128xi1>, vector<1x128xf32>
    %cst_13 = arith.constant 0.000000e+00 : f32
    %20 = vector.broadcast %cst_13 : f32 to vector<1x32xf32>
    %cst_14 = arith.constant 0.000000e+00 : f32
    %21 = vector.broadcast %cst_14 : f32 to vector<1x32xf32>
    %c0_15 = arith.constant 0 : index
    %c0_16 = arith.constant 0 : index
    %22 = vector.load %arg7[%c0_15, %c0_16] : memref<8x128xf32, #tpu.memory_space<vmem>>, vector<1x128xf32>
    %cst_17 = arith.constant dense<0.000000e+00> : vector<1x128xf32>
    %23 = tpu.matmul %20, %7, %cst_17 {dimension_numbers = #tpu.dot_dimension_numbers<[1], [0], [0], [1], [0, 0, 1, 1], [], []>} : vector<1x32xf32>, vector<32x128xf32>, vector<1x128xf32> -> vector<1x128xf32>
    %24 = arith.addf %22, %23 : vector<1x128xf32>
    %25 = arith.mulf %24, %16 : vector<1x128xf32>
    %26 = math.tanh %25 : vector<1x128xf32>
    %27 = arith.mulf %16, %26 : vector<1x128xf32>
    %28 = arith.addf %27, %19 : vector<1x128xf32>
    %29 = vector.extract_strided_slice %28 {offsets = [0, 0], sizes = [1, 32], strides = [1, 1]} : vector<1x128xf32> to vector<1x32xf32>
    %30 = vector.extract_strided_slice %28 {offsets = [0, 32], sizes = [1, 32], strides = [1, 1]} : vector<1x128xf32> to vector<1x32xf32>
    %31 = vector.extract_strided_slice %28 {offsets = [0, 64], sizes = [1, 32], strides = [1, 1]} : vector<1x128xf32> to vector<1x32xf32>
    %32 = vector.extract_strided_slice %28 {offsets = [0, 96], sizes = [1, 32], strides = [1, 1]} : vector<1x128xf32> to vector<1x32xf32>
    %33 = arith.mulf %30, %21 : vector<1x32xf32>
    %34 = arith.mulf %29, %31 : vector<1x32xf32>
    %35 = arith.addf %33, %34 : vector<1x32xf32>
    %36 = math.tanh %35 : vector<1x32xf32>
    %37 = arith.mulf %32, %36 : vector<1x32xf32>
    %c1 = arith.constant 1 : index
    %c0_18 = arith.constant 0 : index
    %38 = vector.load %arg7[%c1, %c0_18] : memref<8x128xf32, #tpu.memory_space<vmem>>, vector<1x128xf32>
    %cst_19 = arith.constant dense<0.000000e+00> : vector<1x128xf32>
    %39 = tpu.matmul %37, %7, %cst_19 {dimension_numbers = #tpu.dot_dimension_numbers<[1], [0], [0], [1], [0, 0, 1, 1], [], []>} : vector<1x32xf32>, vector<32x128xf32>, vector<1x128xf32> -> vector<1x128xf32>
    %40 = arith.addf %38, %39 : vector<1x128xf32>
    %41 = arith.mulf %40, %16 : vector<1x128xf32>
    %42 = math.tanh %41 : vector<1x128xf32>
    %43 = arith.mulf %16, %42 : vector<1x128xf32>
    %44 = arith.addf %43, %19 : vector<1x128xf32>
    %45 = vector.extract_strided_slice %44 {offsets = [0, 0], sizes = [1, 32], strides = [1, 1]} : vector<1x128xf32> to vector<1x32xf32>
    %46 = vector.extract_strided_slice %44 {offsets = [0, 32], sizes = [1, 32], strides = [1, 1]} : vector<1x128xf32> to vector<1x32xf32>
    %47 = vector.extract_strided_slice %44 {offsets = [0, 64], sizes = [1, 32], strides = [1, 1]} : vector<1x128xf32> to vector<1x32xf32>
    %48 = vector.extract_strided_slice %44 {offsets = [0, 96], sizes = [1, 32], strides = [1, 1]} : vector<1x128xf32> to vector<1x32xf32>
    %49 = arith.mulf %46, %35 : vector<1x32xf32>
    %50 = arith.mulf %45, %47 : vector<1x32xf32>
    %51 = arith.addf %49, %50 : vector<1x32xf32>
    %52 = math.tanh %51 : vector<1x32xf32>
    %53 = arith.mulf %48, %52 : vector<1x32xf32>
    %c2 = arith.constant 2 : index
    %c0_20 = arith.constant 0 : index
    %54 = vector.load %arg7[%c2, %c0_20] : memref<8x128xf32, #tpu.memory_space<vmem>>, vector<1x128xf32>
    %cst_21 = arith.constant dense<0.000000e+00> : vector<1x128xf32>
    %55 = tpu.matmul %53, %7, %cst_21 {dimension_numbers = #tpu.dot_dimension_numbers<[1], [0], [0], [1], [0, 0, 1, 1], [], []>} : vector<1x32xf32>, vector<32x128xf32>, vector<1x128xf32> -> vector<1x128xf32>
    %56 = arith.addf %54, %55 : vector<1x128xf32>
    %57 = arith.mulf %56, %16 : vector<1x128xf32>
    %58 = math.tanh %57 : vector<1x128xf32>
    %59 = arith.mulf %16, %58 : vector<1x128xf32>
    %60 = arith.addf %59, %19 : vector<1x128xf32>
    %61 = vector.extract_strided_slice %60 {offsets = [0, 0], sizes = [1, 32], strides = [1, 1]} : vector<1x128xf32> to vector<1x32xf32>
    %62 = vector.extract_strided_slice %60 {offsets = [0, 32], sizes = [1, 32], strides = [1, 1]} : vector<1x128xf32> to vector<1x32xf32>
    %63 = vector.extract_strided_slice %60 {offsets = [0, 64], sizes = [1, 32], strides = [1, 1]} : vector<1x128xf32> to vector<1x32xf32>
    %64 = vector.extract_strided_slice %60 {offsets = [0, 96], sizes = [1, 32], strides = [1, 1]} : vector<1x128xf32> to vector<1x32xf32>
    %65 = arith.mulf %62, %51 : vector<1x32xf32>
    %66 = arith.mulf %61, %63 : vector<1x32xf32>
    %67 = arith.addf %65, %66 : vector<1x32xf32>
    %68 = math.tanh %67 : vector<1x32xf32>
    %69 = arith.mulf %64, %68 : vector<1x32xf32>
    %c3 = arith.constant 3 : index
    %c0_22 = arith.constant 0 : index
    %70 = vector.load %arg7[%c3, %c0_22] : memref<8x128xf32, #tpu.memory_space<vmem>>, vector<1x128xf32>
    %cst_23 = arith.constant dense<0.000000e+00> : vector<1x128xf32>
    %71 = tpu.matmul %69, %7, %cst_23 {dimension_numbers = #tpu.dot_dimension_numbers<[1], [0], [0], [1], [0, 0, 1, 1], [], []>} : vector<1x32xf32>, vector<32x128xf32>, vector<1x128xf32> -> vector<1x128xf32>
    %72 = arith.addf %70, %71 : vector<1x128xf32>
    %73 = arith.mulf %72, %16 : vector<1x128xf32>
    %74 = math.tanh %73 : vector<1x128xf32>
    %75 = arith.mulf %16, %74 : vector<1x128xf32>
    %76 = arith.addf %75, %19 : vector<1x128xf32>
    %77 = vector.extract_strided_slice %76 {offsets = [0, 0], sizes = [1, 32], strides = [1, 1]} : vector<1x128xf32> to vector<1x32xf32>
    %78 = vector.extract_strided_slice %76 {offsets = [0, 32], sizes = [1, 32], strides = [1, 1]} : vector<1x128xf32> to vector<1x32xf32>
    %79 = vector.extract_strided_slice %76 {offsets = [0, 64], sizes = [1, 32], strides = [1, 1]} : vector<1x128xf32> to vector<1x32xf32>
    %80 = vector.extract_strided_slice %76 {offsets = [0, 96], sizes = [1, 32], strides = [1, 1]} : vector<1x128xf32> to vector<1x32xf32>
    %81 = arith.mulf %78, %67 : vector<1x32xf32>
    %82 = arith.mulf %77, %79 : vector<1x32xf32>
    %83 = arith.addf %81, %82 : vector<1x32xf32>
    %84 = math.tanh %83 : vector<1x32xf32>
    %85 = arith.mulf %80, %84 : vector<1x32xf32>
    %c4 = arith.constant 4 : index
    %c0_24 = arith.constant 0 : index
    %86 = vector.load %arg7[%c4, %c0_24] : memref<8x128xf32, #tpu.memory_space<vmem>>, vector<1x128xf32>
    %cst_25 = arith.constant dense<0.000000e+00> : vector<1x128xf32>
    %87 = tpu.matmul %85, %7, %cst_25 {dimension_numbers = #tpu.dot_dimension_numbers<[1], [0], [0], [1], [0, 0, 1, 1], [], []>} : vector<1x32xf32>, vector<32x128xf32>, vector<1x128xf32> -> vector<1x128xf32>
    %88 = arith.addf %86, %87 : vector<1x128xf32>
    %89 = arith.mulf %88, %16 : vector<1x128xf32>
    %90 = math.tanh %89 : vector<1x128xf32>
    %91 = arith.mulf %16, %90 : vector<1x128xf32>
    %92 = arith.addf %91, %19 : vector<1x128xf32>
    %93 = vector.extract_strided_slice %92 {offsets = [0, 0], sizes = [1, 32], strides = [1, 1]} : vector<1x128xf32> to vector<1x32xf32>
    %94 = vector.extract_strided_slice %92 {offsets = [0, 32], sizes = [1, 32], strides = [1, 1]} : vector<1x128xf32> to vector<1x32xf32>
    %95 = vector.extract_strided_slice %92 {offsets = [0, 64], sizes = [1, 32], strides = [1, 1]} : vector<1x128xf32> to vector<1x32xf32>
    %96 = vector.extract_strided_slice %92 {offsets = [0, 96], sizes = [1, 32], strides = [1, 1]} : vector<1x128xf32> to vector<1x32xf32>
    %97 = arith.mulf %94, %83 : vector<1x32xf32>
    %98 = arith.mulf %93, %95 : vector<1x32xf32>
    %99 = arith.addf %97, %98 : vector<1x32xf32>
    %100 = math.tanh %99 : vector<1x32xf32>
    %101 = arith.mulf %96, %100 : vector<1x32xf32>
    %c5 = arith.constant 5 : index
    %c0_26 = arith.constant 0 : index
    %102 = vector.load %arg7[%c5, %c0_26] : memref<8x128xf32, #tpu.memory_space<vmem>>, vector<1x128xf32>
    %cst_27 = arith.constant dense<0.000000e+00> : vector<1x128xf32>
    %103 = tpu.matmul %101, %7, %cst_27 {dimension_numbers = #tpu.dot_dimension_numbers<[1], [0], [0], [1], [0, 0, 1, 1], [], []>} : vector<1x32xf32>, vector<32x128xf32>, vector<1x128xf32> -> vector<1x128xf32>
    %104 = arith.addf %102, %103 : vector<1x128xf32>
    %105 = arith.mulf %104, %16 : vector<1x128xf32>
    %106 = math.tanh %105 : vector<1x128xf32>
    %107 = arith.mulf %16, %106 : vector<1x128xf32>
    %108 = arith.addf %107, %19 : vector<1x128xf32>
    %109 = vector.extract_strided_slice %108 {offsets = [0, 0], sizes = [1, 32], strides = [1, 1]} : vector<1x128xf32> to vector<1x32xf32>
    %110 = vector.extract_strided_slice %108 {offsets = [0, 32], sizes = [1, 32], strides = [1, 1]} : vector<1x128xf32> to vector<1x32xf32>
    %111 = vector.extract_strided_slice %108 {offsets = [0, 64], sizes = [1, 32], strides = [1, 1]} : vector<1x128xf32> to vector<1x32xf32>
    %112 = vector.extract_strided_slice %108 {offsets = [0, 96], sizes = [1, 32], strides = [1, 1]} : vector<1x128xf32> to vector<1x32xf32>
    %113 = arith.mulf %110, %99 : vector<1x32xf32>
    %114 = arith.mulf %109, %111 : vector<1x32xf32>
    %115 = arith.addf %113, %114 : vector<1x32xf32>
    %116 = math.tanh %115 : vector<1x32xf32>
    %117 = arith.mulf %112, %116 : vector<1x32xf32>
    %c6 = arith.constant 6 : index
    %c0_28 = arith.constant 0 : index
    %118 = vector.load %arg7[%c6, %c0_28] : memref<8x128xf32, #tpu.memory_space<vmem>>, vector<1x128xf32>
    %cst_29 = arith.constant dense<0.000000e+00> : vector<1x128xf32>
    %119 = tpu.matmul %117, %7, %cst_29 {dimension_numbers = #tpu.dot_dimension_numbers<[1], [0], [0], [1], [0, 0, 1, 1], [], []>} : vector<1x32xf32>, vector<32x128xf32>, vector<1x128xf32> -> vector<1x128xf32>
    %120 = arith.addf %118, %119 : vector<1x128xf32>
    %121 = arith.mulf %120, %16 : vector<1x128xf32>
    %122 = math.tanh %121 : vector<1x128xf32>
    %123 = arith.mulf %16, %122 : vector<1x128xf32>
    %124 = arith.addf %123, %19 : vector<1x128xf32>
    %125 = vector.extract_strided_slice %124 {offsets = [0, 0], sizes = [1, 32], strides = [1, 1]} : vector<1x128xf32> to vector<1x32xf32>
    %126 = vector.extract_strided_slice %124 {offsets = [0, 32], sizes = [1, 32], strides = [1, 1]} : vector<1x128xf32> to vector<1x32xf32>
    %127 = vector.extract_strided_slice %124 {offsets = [0, 64], sizes = [1, 32], strides = [1, 1]} : vector<1x128xf32> to vector<1x32xf32>
    %128 = vector.extract_strided_slice %124 {offsets = [0, 96], sizes = [1, 32], strides = [1, 1]} : vector<1x128xf32> to vector<1x32xf32>
    %129 = arith.mulf %126, %115 : vector<1x32xf32>
    %130 = arith.mulf %125, %127 : vector<1x32xf32>
    %131 = arith.addf %129, %130 : vector<1x32xf32>
    %132 = math.tanh %131 : vector<1x32xf32>
    %133 = arith.mulf %128, %132 : vector<1x32xf32>
    %c7 = arith.constant 7 : index
    %c0_30 = arith.constant 0 : index
    %134 = vector.load %arg7[%c7, %c0_30] : memref<8x128xf32, #tpu.memory_space<vmem>>, vector<1x128xf32>
    %cst_31 = arith.constant dense<0.000000e+00> : vector<1x128xf32>
    %135 = tpu.matmul %133, %7, %cst_31 {dimension_numbers = #tpu.dot_dimension_numbers<[1], [0], [0], [1], [0, 0, 1, 1], [], []>} : vector<1x32xf32>, vector<32x128xf32>, vector<1x128xf32> -> vector<1x128xf32>
    %136 = arith.addf %134, %135 : vector<1x128xf32>
    %137 = arith.mulf %136, %16 : vector<1x128xf32>
    %138 = math.tanh %137 : vector<1x128xf32>
    %139 = arith.mulf %16, %138 : vector<1x128xf32>
    %140 = arith.addf %139, %19 : vector<1x128xf32>
    %141 = vector.extract_strided_slice %140 {offsets = [0, 0], sizes = [1, 32], strides = [1, 1]} : vector<1x128xf32> to vector<1x32xf32>
    %142 = vector.extract_strided_slice %140 {offsets = [0, 32], sizes = [1, 32], strides = [1, 1]} : vector<1x128xf32> to vector<1x32xf32>
    %143 = vector.extract_strided_slice %140 {offsets = [0, 64], sizes = [1, 32], strides = [1, 1]} : vector<1x128xf32> to vector<1x32xf32>
    %144 = vector.extract_strided_slice %140 {offsets = [0, 96], sizes = [1, 32], strides = [1, 1]} : vector<1x128xf32> to vector<1x32xf32>
    %145 = arith.mulf %142, %131 : vector<1x32xf32>
    %146 = arith.mulf %141, %143 : vector<1x32xf32>
    %147 = arith.addf %145, %146 : vector<1x32xf32>
    %148 = math.tanh %147 : vector<1x32xf32>
    %149 = arith.mulf %144, %148 : vector<1x32xf32>
    %c0_32 = arith.constant 0 : index
    %c0_33 = arith.constant 0 : index
    %150 = vector.load %arg4[%c0_32, %c0_33] : memref<32x128xf32, #tpu.memory_space<vmem>>, vector<32x128xf32>
    %cst_34 = arith.constant dense<0.000000e+00> : vector<1x128xf32>
    %151 = tpu.matmul %149, %150, %cst_34 {dimension_numbers = #tpu.dot_dimension_numbers<[1], [0], [0], [1], [0, 0, 1, 1], [], []>} : vector<1x32xf32>, vector<32x128xf32>, vector<1x128xf32> -> vector<1x128xf32>
    %c0_35 = arith.constant 0 : index
    %c0_36 = arith.constant 0 : index
    %152 = vector.load %arg5[%c0_35, %c0_36] : memref<1x128xf32, #tpu.memory_space<vmem>>, vector<1x128xf32>
    %153 = arith.addf %151, %152 : vector<1x128xf32>
    %c0_37 = arith.constant 0 : index
    %c0_38 = arith.constant 0 : index
    %154 = vector.load %arg6[%c0_37, %c0_38] : memref<1x128xf32, #tpu.memory_space<vmem>>, vector<1x128xf32>
    tpu.vector_store %arg6[%c0_37, %c0_38], %153 {strides = array<i32>} : memref<1x128xf32, #tpu.memory_space<vmem>>, vector<1x128xf32>,
    return
  }
}

</mosaic_0001>

<llo_original>
// kernel: lstm_forward.1
$region0: #{lstm_forward.1}
  #allocation0 [shape = 'u32[]', space=smem, size = 0x4, offset = 0x4, fixed_abs, tag = 'smem constant byte address 0x4 - core index']
  #allocation1 [shape = 'u32[72,128]{1,0:T(1,128)}', space=vmem, size = 0x9000, scoped, tag = 'internal scratch']
  #allocation2 [shape = 'f32[8,128]{1,0:T(8,128)}', space=vmem, size = 0x1000, scoped, tag = 'scratch operand']
  %s0 = inlined_call_operand.hbm [shape: f32[8,16], index: 0, kind: input, shape index: {}]
  %s1 = inlined_call_operand.hbm [shape: f32[16,128], index: 1, kind: input, shape index: {}]
  %s2 = inlined_call_operand.vmem [shape: f32[1,128], index: 2, kind: input, shape index: {}]
  %s3 = inlined_call_operand.hbm [shape: f32[32,128], index: 3, kind: input, shape index: {}]
  %s4 = inlined_call_operand.hbm [shape: f32[32,128], index: 4, kind: input, shape index: {}]
  %s5 = inlined_call_operand.vmem [shape: f32[1,128], index: 5, kind: input, shape index: {}]
  %s6 = inlined_call_operand.hbm [shape: f32[1,128], index: 6, kind: output, shape index: {}]
  %s7 = sld [smem:[#allocation0]]
  $region50: #{lstm_forward.1} parent=0
    _
  %s9 = ssub.s32 1, %s7
  %s10 = scalar_select 0, %s9, %s7
  $region1: #{lstm_forward.1} parent=0
    #allocation3 [shape = 'u8[4096]{0}', space=vmem, size = 0x1000, scoped, tag = 'input window, operand 0, single buffered']
    #allocation4 [shape = 's32[1]{0}', space=sflag, size = 0x4, scoped, tag = 'scoped memory for lstm_forward.1']
    #allocation5 [shape = 's32[1]{0}', space=sflag, size = 0x4, scoped, tag = 'scoped memory for lstm_forward.1']
    #allocation6 [shape = 'u8[8192]{0}', space=vmem, size = 0x2000, scoped, tag = 'input window, operand 1, single buffered']
    #allocation7 [shape = 's32[1]{0}', space=sflag, size = 0x4, scoped, tag = 'scoped memory for lstm_forward.1']
    #allocation8 [shape = 'u8[16384]{0}', space=vmem, size = 0x4000, scoped, tag = 'input window, operand 3, single buffered']
    #allocation9 [shape = 'u8[16384]{0}', space=vmem, size = 0x4000, scoped, tag = 'input window, operand 4, single buffered']
    #allocation10 [shape = 's32[1]{0}', space=sflag, size = 0x4, scoped, tag = 'scoped memory for lstm_forward.1']
    #allocation11 [shape = 'u8[512]{0}', space=vmem, size = 0x400, scoped, tag = 'output window, operand 0, single buffered']
    %11 = vsyncpa [#allocation4], 0
    %12 = vsyncpa [#allocation7], 0
    %13 = vsyncpa [#allocation10], 0
    %14 = vsyncpa [#allocation5], 0
    // Predicated region
    $region2: #{lstm_forward.1} parent=1 // pred_check
      _
    $region3: #{lstm_forward.1} parent=1 // pred_check_branch
      %16 = sbr.rel (0) target = $region5
    $region4: #{lstm_forward.1} parent=1 // pred_region
      %18 = vsyncadd [#allocation4], 0
      %s20 = sshll.u32 %s0, 4
      %s21 = int_to_ptr.hbm [resolvable:$true] %s20
      %s22 = sshll.u32 [#allocation3], 4
      %s23 = int_to_ptr.vmem [resolvable:$true] %s22
      %25 = dma.hbm_to_vmem [thread:$0]  %s21, 128, %s23, [#allocation4]
    $region5: #{lstm_forward.1} parent=1 // pred_fallthru
      _
    // Predicated region
    $region6: #{lstm_forward.1} parent=1 // pred_check
      _
    $region7: #{lstm_forward.1} parent=1 // pred_check_branch
      %27 = sbr.rel (0) target = $region9
    $region8: #{lstm_forward.1} parent=1 // pred_region
      %29 = vsyncadd [#allocation7], 0
      %s30 = sshll.u32 %s1, 4
      %s31 = int_to_ptr.hbm [resolvable:$true] %s30
      %s32 = sshll.u32 [#allocation6], 4
      %s33 = int_to_ptr.vmem [resolvable:$true] %s32
      %38 = dma.hbm_to_vmem [thread:$0]  %s31, 256, %s33, [#allocation7], 128, 128, 8
    $region9: #{lstm_forward.1} parent=1 // pred_fallthru
      _
    // Predicated region
    $region10: #{lstm_forward.1} parent=1 // pred_check
      _
    $region11: #{lstm_forward.1} parent=1 // pred_check_branch
      %40 = sbr.rel (0) target = $region13
    $region12: #{lstm_forward.1} parent=1 // pred_region
      _
    $region13: #{lstm_forward.1} parent=1 // pred_fallthru
      _
    // Predicated region
    $region14: #{lstm_forward.1} parent=1 // pred_check
      _
    $region15: #{lstm_forward.1} parent=1 // pred_check_branch
      %42 = sbr.rel (0) target = $region17
    $region16: #{lstm_forward.1} parent=1 // pred_region
      %44 = vsyncadd [#allocation7], 0
      %s45 = sshll.u32 %s3, 4
      %s46 = int_to_ptr.hbm [resolvable:$true] %s45
      %s47 = sshll.u32 [#allocation8], 4
      %s48 = int_to_ptr.vmem [resolvable:$true] %s47
      %53 = dma.hbm_to_vmem [thread:$0]  %s46, 512, %s48, [#allocation7], 128, 128, 8
    $region17: #{lstm_forward.1} parent=1 // pred_fallthru
      _
    // Predicated region
    $region18: #{lstm_forward.1} parent=1 // pred_check
      _
    $region19: #{lstm_forward.1} parent=1 // pred_check_branch
      %55 = sbr.rel (0) target = $region21
    $region20: #{lstm_forward.1} parent=1 // pred_region
      %57 = vsyncadd [#allocation10], 0
      %s58 = sshll.u32 %s4, 4
      %s59 = int_to_ptr.hbm [resolvable:$true] %s58
      %s60 = sshll.u32 [#allocation9], 4
      %s61 = int_to_ptr.vmem [resolvable:$true] %s60
      %66 = dma.hbm_to_vmem [thread:$0]  %s59, 512, %s61, [#allocation10], 128, 128, 8
    $region21: #{lstm_forward.1} parent=1 // pred_fallthru
      _
    // Predicated region
    $region22: #{lstm_forward.1} parent=1 // pred_check
      _
    $region23: #{lstm_forward.1} parent=1 // pred_check_branch
      %68 = sbr.rel (0) target = $region25
    $region24: #{lstm_forward.1} parent=1 // pred_region
      _
    $region25: #{lstm_forward.1} parent=1 // pred_fallthru
      _
    // Predicated region
    $region26: #{lstm_forward.1} parent=1 // pred_check
      _
    $region27: #{lstm_forward.1} parent=1 // pred_check_branch
      %70 = sbr.rel (0) target = $region29
    $region28: #{lstm_forward.1} parent=1 // pred_region
      %72 = dma.done [#allocation4], 128
    $region29: #{lstm_forward.1} parent=1 // pred_fallthru
      _
    // Predicated region
    $region30: #{lstm_forward.1} parent=1 // pred_check
      _
    $region31: #{lstm_forward.1} parent=1 // pred_check_branch
      %74 = sbr.rel (0) target = $region33
    $region32: #{lstm_forward.1} parent=1 // pred_region
      %76 = dma.done [#allocation7], 256
    $region33: #{lstm_forward.1} parent=1 // pred_fallthru
      _
    // Predicated region
    $region34: #{lstm_forward.1} parent=1 // pred_check
      _
    $region35: #{lstm_forward.1} parent=1 // pred_check_branch
      %78 = sbr.rel (0) target = $region37
    $region36: #{lstm_forward.1} parent=1 // pred_region
      %80 = dma.done [#allocation7], 512
    $region37: #{lstm_forward.1} parent=1 // pred_fallthru
      _
    // Predicated region
    $region38: #{lstm_forward.1} parent=1 // pred_check
      _
    $region39: #{lstm_forward.1} parent=1 // pred_check_branch
      %82 = sbr.rel (0) target = $region41
    $region40: #{lstm_forward.1} parent=1 // pred_region
      %84 = dma.done [#allocation10], 512
    $region41: #{lstm_forward.1} parent=1 // pred_fallthru
      _
    %v85 = vld [vmem:[#allocation3] sm:$0xff]
    %v86 = vld [vmem:[#allocation6] sm:$0xff]
    %v87 = vld [vmem:[#allocation6 + $0x8] sm:$0xff]
    %v88 = vld [vmem:[%s2] sm:$0x1]
    %v90 = vperm.slane %v88, 0
    %vm92 = vcmask 130048
    %v94 = vsel %vm92, %v85, 0
    %96 = vmatpush.msra.mxu0 0.0
    %97 = vmatpush.msra.mxu0 0.0
    %98 = vmatpush.msra.mxu0 0.0
    %99 = vmatpush.msra.mxu0 0.0
    %100 = vmatpush.msra.mxu0 0.0
    %101 = vmatpush.msra.mxu0 0.0
    %102 = vmatpush.msra.mxu0 0.0
    %103 = vmatpush.msra.mxu0 0.0
    %104 = vmatpush.msra.mxu0 0.0
    %105 = vmatpush.msra.mxu0 0.0
    %106 = vmatpush.msra.mxu0 0.0
    %107 = vmatpush.msra.mxu0 0.0
    %108 = vmatpush.msra.mxu0 0.0
    %109 = vmatpush.msra.mxu0 0.0
    %110 = vmatpush.msra.mxu0 %v87
    %111 = vmatpush.msra.mxu0 %v86
    %112 = vmatmul.f32.gmra.mxu0 %v94
    %v113 = vpop.f32.mrf.mxu0
    %v114 = vadd.f32 %v90, %v113
    %115 = vdwg.mxu0
    %116 = vst [vmem:[#allocation2] sm:$0xff] %v114
    %v117 = vld [vmem:[#allocation8] sm:$0xff]
    %v118 = vld [vmem:[#allocation8 + $0x8] sm:$0xff]
    %v119 = vld [vmem:[#allocation8 + $0x10] sm:$0xff]
    %v120 = vld [vmem:[#allocation8 + $0x18] sm:$0xff]
    %v121 = vlaneseq
    %v122 = vand.u32 %v121, 127
    %vm123 = vcmp.ge.s32.totalorder %v122, 64
    %vm124 = vcmp.lt.s32.totalorder %v122, 96
    %vm125 = vmand %vm123, %vm124
    %v126 = vsel %vm125, 1.0, 0.5
    %v127 = vsel %vm125, 0.0, 0.5
    %v128 = vld [vmem:[#allocation2] sm:$0x1]
    %vm129 = vcmask 261120
    %v131 = vsel %vm129, 0.0, 0
    %133 = vmatpush.msra.mxu0 0.0
    %134 = vmatpush.msra.mxu0 0.0
    %135 = vmatpush.msra.mxu0 0.0
    %136 = vmatpush.msra.mxu0 0.0
    %137 = vmatpush.msra.mxu0 0.0
    %138 = vmatpush.msra.mxu0 0.0
    %139 = vmatpush.msra.mxu0 0.0
    %140 = vmatpush.msra.mxu0 0.0
    %141 = vmatpush.msra.mxu0 0.0
    %142 = vmatpush.msra.mxu0 0.0
    %143 = vmatpush.msra.mxu0 0.0
    %144 = vmatpush.msra.mxu0 0.0
    %145 = vmatpush.msra.mxu0 %v120
    %146 = vmatpush.msra.mxu0 %v119
    %147 = vmatpush.msra.mxu0 %v118
    %148 = vmatpush.msra.mxu0 %v117
    %149 = vmatmul.f32.gmra.mxu0 %v131
    %v150 = vpop.f32.mrf.mxu0
    %v151 = vadd.f32 0.0, %v150
    %152 = vdwg.mxu0
    %v153 = vadd.f32 %v128, %v151
    %v154 = vmul.f32 %v153, %v126
    %v155 = vtanh.pop %v154
    %v156 = vmul.f32 %v126, %v155
    %v157 = vadd.f32 %v156, %v127
    %v158 = vmul.f32 %v157, 0.0
    %160 = vrot.lane.b32.xlu0 %v157, 64
    %v161 = vpop.permute.xlu0 %160
    %v163 = vmul.f32 %v157, %v161
    %165 = vrot.lane.b32.xlu0 %v163, 32
    %v166 = vpop.permute.xlu0 %165
    %v168 = vadd.f32 %v158, %v166
    %v169 = vtanh.pop %v168
    %171 = vrot.lane.b32.xlu0 %v169, 64
    %v172 = vpop.permute.xlu0 %171
    %v174 = vmul.f32 %v157, %v172
    %v175 = vld [vmem:[#allocation2 + $0x1] sm:$0x1]
    %177 = vrot.lane.b32.xlu0 %v174, 32
    %v178 = vpop.permute.xlu0 %177
    %v179 = vsel %vm129, %v178, 0
    %181 = vmatpush.msra.mxu0 0.0
    %182 = vmatpush.msra.mxu0 0.0
    %183 = vmatpush.msra.mxu0 0.0
    %184 = vmatpush.msra.mxu0 0.0
    %185 = vmatpush.msra.mxu0 0.0
    %186 = vmatpush.msra.mxu0 0.0
    %187 = vmatpush.msra.mxu0 0.0
    %188 = vmatpush.msra.mxu0 0.0
    %189 = vmatpush.msra.mxu0 0.0
    %190 = vmatpush.msra.mxu0 0.0
    %191 = vmatpush.msra.mxu0 0.0
    %192 = vmatpush.msra.mxu0 0.0
    %193 = vmatpush.msra.mxu0 %v120
    %194 = vmatpush.msra.mxu0 %v119
    %195 = vmatpush.msra.mxu0 %v118
    %196 = vmatpush.msra.mxu0 %v117
    %197 = vmatmul.f32.gmra.mxu0 %v179
    %v198 = vpop.f32.mrf.mxu0
    %v199 = vadd.f32 0.0, %v198
    %200 = vdwg.mxu0
    %v201 = vadd.f32 %v175, %v199
    %v202 = vmul.f32 %v201, %v126
    %v203 = vtanh.pop %v202
    %v204 = vmul.f32 %v126, %v203
    %v205 = vadd.f32 %v204, %v127
    %v206 = vmul.f32 %v205, %v168
    %208 = vrot.lane.b32.xlu0 %v205, 64
    %v209 = vpop.permute.xlu0 %208
    %v211 = vmul.f32 %v205, %v209
    %213 = vrot.lane.b32.xlu0 %v211, 32
    %v214 = vpop.permute.xlu0 %213
    %v216 = vadd.f32 %v206, %v214
    %v217 = vtanh.pop %v216
    %219 = vrot.lane.b32.xlu0 %v217, 64
    %v220 = vpop.permute.xlu0 %219
    %v222 = vmul.f32 %v205, %v220
    %v223 = vld [vmem:[#allocation2 + $0x2] sm:$0x1]
    %225 = vrot.lane.b32.xlu0 %v222, 32
    %v226 = vpop.permute.xlu0 %225
    %v227 = vsel %vm129, %v226, 0
    %229 = vmatpush.msra.mxu0 0.0
    %230 = vmatpush.msra.mxu0 0.0
    %231 = vmatpush.msra.mxu0 0.0
    %232 = vmatpush.msra.mxu0 0.0
    %233 = vmatpush.msra.mxu0 0.0
    %234 = vmatpush.msra.mxu0 0.0
    %235 = vmatpush.msra.mxu0 0.0
    %236 = vmatpush.msra.mxu0 0.0
    %237 = vmatpush.msra.mxu0 0.0
    %238 = vmatpush.msra.mxu0 0.0
    %239 = vmatpush.msra.mxu0 0.0
    %240 = vmatpush.msra.mxu0 0.0
    %241 = vmatpush.msra.mxu0 %v120
    %242 = vmatpush.msra.mxu0 %v119
    %243 = vmatpush.msra.mxu0 %v118
    %244 = vmatpush.msra.mxu0 %v117
    %245 = vmatmul.f32.gmra.mxu0 %v227
    %v246 = vpop.f32.mrf.mxu0
    %v247 = vadd.f32 0.0, %v246
    %248 = vdwg.mxu0
    %v249 = vadd.f32 %v223, %v247
    %v250 = vmul.f32 %v249, %v126
    %v251 = vtanh.pop %v250
    %v252 = vmul.f32 %v126, %v251
    %v253 = vadd.f32 %v252, %v127
    %v254 = vmul.f32 %v253, %v216
    %256 = vrot.lane.b32.xlu0 %v253, 64
    %v257 = vpop.permute.xlu0 %256
    %v259 = vmul.f32 %v253, %v257
    %261 = vrot.lane.b32.xlu0 %v259, 32
    %v262 = vpop.permute.xlu0 %261
    %v264 = vadd.f32 %v254, %v262
    %v265 = vtanh.pop %v264
    %267 = vrot.lane.b32.xlu0 %v265, 64
    %v268 = vpop.permute.xlu0 %267
    %v270 = vmul.f32 %v253, %v268
    %v271 = vld [vmem:[#allocation2 + $0x3] sm:$0x1]
    %273 = vrot.lane.b32.xlu0 %v270, 32
    %v274 = vpop.permute.xlu0 %273
    %v275 = vsel %vm129, %v274, 0
    %277 = vmatpush.msra.mxu0 0.0
    %278 = vmatpush.msra.mxu0 0.0
    %279 = vmatpush.msra.mxu0 0.0
    %280 = vmatpush.msra.mxu0 0.0
    %281 = vmatpush.msra.mxu0 0.0
    %282 = vmatpush.msra.mxu0 0.0
    %283 = vmatpush.msra.mxu0 0.0
    %284 = vmatpush.msra.mxu0 0.0
    %285 = vmatpush.msra.mxu0 0.0
    %286 = vmatpush.msra.mxu0 0.0
    %287 = vmatpush.msra.mxu0 0.0
    %288 = vmatpush.msra.mxu0 0.0
    %289 = vmatpush.msra.mxu0 %v120
    %290 = vmatpush.msra.mxu0 %v119
    %291 = vmatpush.msra.mxu0 %v118
    %292 = vmatpush.msra.mxu0 %v117
    %293 = vmatmul.f32.gmra.mxu0 %v275
    %v294 = vpop.f32.mrf.mxu0
    %v295 = vadd.f32 0.0, %v294
    %296 = vdwg.mxu0
    %v297 = vadd.f32 %v271, %v295
    %v298 = vmul.f32 %v297, %v126
    %v299 = vtanh.pop %v298
    %v300 = vmul.f32 %v126, %v299
    %v301 = vadd.f32 %v300, %v127
    %v302 = vmul.f32 %v301, %v264
    %304 = vrot.lane.b32.xlu0 %v301, 64
    %v305 = vpop.permute.xlu0 %304
    %v307 = vmul.f32 %v301, %v305
    %309 = vrot.lane.b32.xlu0 %v307, 32
    %v310 = vpop.permute.xlu0 %309
    %v312 = vadd.f32 %v302, %v310
    %v313 = vtanh.pop %v312
    %315 = vrot.lane.b32.xlu0 %v313, 64
    %v316 = vpop.permute.xlu0 %315
    %v318 = vmul.f32 %v301, %v316
    %v319 = vld [vmem:[#allocation2 + $0x4] sm:$0x1]
    %321 = vrot.lane.b32.xlu0 %v318, 32
    %v322 = vpop.permute.xlu0 %321
    %v323 = vsel %vm129, %v322, 0
    %325 = vmatpush.msra.mxu0 0.0
    %326 = vmatpush.msra.mxu0 0.0
    %327 = vmatpush.msra.mxu0 0.0
    %328 = vmatpush.msra.mxu0 0.0
    %329 = vmatpush.msra.mxu0 0.0
    %330 = vmatpush.msra.mxu0 0.0
    %331 = vmatpush.msra.mxu0 0.0
    %332 = vmatpush.msra.mxu0 0.0
    %333 = vmatpush.msra.mxu0 0.0
    %334 = vmatpush.msra.mxu0 0.0
    %335 = vmatpush.msra.mxu0 0.0
    %336 = vmatpush.msra.mxu0 0.0
    %337 = vmatpush.msra.mxu0 %v120
    %338 = vmatpush.msra.mxu0 %v119
    %339 = vmatpush.msra.mxu0 %v118
    %340 = vmatpush.msra.mxu0 %v117
    %341 = vmatmul.f32.gmra.mxu0 %v323
    %v342 = vpop.f32.mrf.mxu0
    %v343 = vadd.f32 0.0, %v342
    %344 = vdwg.mxu0
    %v345 = vadd.f32 %v319, %v343
    %v346 = vmul.f32 %v345, %v126
    %v347 = vtanh.pop %v346
    %v348 = vmul.f32 %v126, %v347
    %v349 = vadd.f32 %v348, %v127
    %v350 = vmul.f32 %v349, %v312
    %352 = vrot.lane.b32.xlu0 %v349, 64
    %v353 = vpop.permute.xlu0 %352
    %v355 = vmul.f32 %v349, %v353
    %357 = vrot.lane.b32.xlu0 %v355, 32
    %v358 = vpop.permute.xlu0 %357
    %v360 = vadd.f32 %v350, %v358
    %v361 = vtanh.pop %v360
    %363 = vrot.lane.b32.xlu0 %v361, 64
    %v364 = vpop.permute.xlu0 %363
    %v366 = vmul.f32 %v349, %v364
    %v367 = vld [vmem:[#allocation2 + $0x5] sm:$0x1]
    %369 = vrot.lane.b32.xlu0 %v366, 32
    %v370 = vpop.permute.xlu0 %369
    %v371 = vsel %vm129, %v370, 0
    %373 = vmatpush.msra.mxu0 0.0
    %374 = vmatpush.msra.mxu0 0.0
    %375 = vmatpush.msra.mxu0 0.0
    %376 = vmatpush.msra.mxu0 0.0
    %377 = vmatpush.msra.mxu0 0.0
    %378 = vmatpush.msra.mxu0 0.0
    %379 = vmatpush.msra.mxu0 0.0
    %380 = vmatpush.msra.mxu0 0.0
    %381 = vmatpush.msra.mxu0 0.0
    %382 = vmatpush.msra.mxu0 0.0
    %383 = vmatpush.msra.mxu0 0.0
    %384 = vmatpush.msra.mxu0 0.0
    %385 = vmatpush.msra.mxu0 %v120
    %386 = vmatpush.msra.mxu0 %v119
    %387 = vmatpush.msra.mxu0 %v118
    %388 = vmatpush.msra.mxu0 %v117
    %389 = vmatmul.f32.gmra.mxu0 %v371
    %v390 = vpop.f32.mrf.mxu0
    %v391 = vadd.f32 0.0, %v390
    %392 = vdwg.mxu0
    %v393 = vadd.f32 %v367, %v391
    %v394 = vmul.f32 %v393, %v126
    %v395 = vtanh.pop %v394
    %v396 = vmul.f32 %v126, %v395
    %v397 = vadd.f32 %v396, %v127
    %v398 = vmul.f32 %v397, %v360
    %400 = vrot.lane.b32.xlu0 %v397, 64
    %v401 = vpop.permute.xlu0 %400
    %v403 = vmul.f32 %v397, %v401
    %405 = vrot.lane.b32.xlu0 %v403, 32
    %v406 = vpop.permute.xlu0 %405
    %v408 = vadd.f32 %v398, %v406
    %v409 = vtanh.pop %v408
    %411 = vrot.lane.b32.xlu0 %v409, 64
    %v412 = vpop.permute.xlu0 %411
    %v414 = vmul.f32 %v397, %v412
    %v415 = vld [vmem:[#allocation2 + $0x6] sm:$0x1]
    %417 = vrot.lane.b32.xlu0 %v414, 32
    %v418 = vpop.permute.xlu0 %417
    %v419 = vsel %vm129, %v418, 0
    %421 = vmatpush.msra.mxu0 0.0
    %422 = vmatpush.msra.mxu0 0.0
    %423 = vmatpush.msra.mxu0 0.0
    %424 = vmatpush.msra.mxu0 0.0
    %425 = vmatpush.msra.mxu0 0.0
    %426 = vmatpush.msra.mxu0 0.0
    %427 = vmatpush.msra.mxu0 0.0
    %428 = vmatpush.msra.mxu0 0.0
    %429 = vmatpush.msra.mxu0 0.0
    %430 = vmatpush.msra.mxu0 0.0
    %431 = vmatpush.msra.mxu0 0.0
    %432 = vmatpush.msra.mxu0 0.0
    %433 = vmatpush.msra.mxu0 %v120
    %434 = vmatpush.msra.mxu0 %v119
    %435 = vmatpush.msra.mxu0 %v118
    %436 = vmatpush.msra.mxu0 %v117
    %437 = vmatmul.f32.gmra.mxu0 %v419
    %v438 = vpop.f32.mrf.mxu0
    %v439 = vadd.f32 0.0, %v438
    %440 = vdwg.mxu0
    %v441 = vadd.f32 %v415, %v439
    %v442 = vmul.f32 %v441, %v126
    %v443 = vtanh.pop %v442
    %v444 = vmul.f32 %v126, %v443
    %v445 = vadd.f32 %v444, %v127
    %v446 = vmul.f32 %v445, %v408
    %448 = vrot.lane.b32.xlu0 %v445, 64
    %v449 = vpop.permute.xlu0 %448
    %v451 = vmul.f32 %v445, %v449
    %453 = vrot.lane.b32.xlu0 %v451, 32
    %v454 = vpop.permute.xlu0 %453
    %v456 = vadd.f32 %v446, %v454
    %v457 = vtanh.pop %v456
    %459 = vrot.lane.b32.xlu0 %v457, 64
    %v460 = vpop.permute.xlu0 %459
    %v462 = vmul.f32 %v445, %v460
    %v463 = vld [vmem:[#allocation2 + $0x7] sm:$0x1]
    %465 = vrot.lane.b32.xlu0 %v462, 32
    %v466 = vpop.permute.xlu0 %465
    %v467 = vsel %vm129, %v466, 0
    %469 = vmatpush.msra.mxu0 0.0
    %470 = vmatpush.msra.mxu0 0.0
    %471 = vmatpush.msra.mxu0 0.0
    %472 = vmatpush.msra.mxu0 0.0
    %473 = vmatpush.msra.mxu0 0.0
    %474 = vmatpush.msra.mxu0 0.0
    %475 = vmatpush.msra.mxu0 0.0
    %476 = vmatpush.msra.mxu0 0.0
    %477 = vmatpush.msra.mxu0 0.0
    %478 = vmatpush.msra.mxu0 0.0
    %479 = vmatpush.msra.mxu0 0.0
    %480 = vmatpush.msra.mxu0 0.0
    %481 = vmatpush.msra.mxu0 %v120
    %482 = vmatpush.msra.mxu0 %v119
    %483 = vmatpush.msra.mxu0 %v118
    %484 = vmatpush.msra.mxu0 %v117
    %485 = vmatmul.f32.gmra.mxu0 %v467
    %v486 = vpop.f32.mrf.mxu0
    %v487 = vadd.f32 0.0, %v486
    %488 = vdwg.mxu0
    %v489 = vadd.f32 %v463, %v487
    %v490 = vmul.f32 %v489, %v126
    %v491 = vtanh.pop %v490
    %v492 = vmul.f32 %v126, %v491
    %v493 = vadd.f32 %v492, %v127
    %v494 = vmul.f32 %v493, %v456
    %496 = vrot.lane.b32.xlu0 %v493, 64
    %v497 = vpop.permute.xlu0 %496
    %v499 = vmul.f32 %v493, %v497
    %501 = vrot.lane.b32.xlu0 %v499, 32
    %v502 = vpop.permute.xlu0 %501
    %v504 = vadd.f32 %v494, %v502
    %v505 = vtanh.pop %v504
    %507 = vrot.lane.b32.xlu0 %v505, 64
    %v508 = vpop.permute.xlu0 %507
    %v510 = vmul.f32 %v493, %v508
    %v511 = vld [vmem:[#allocation9] sm:$0xff]
    %v512 = vld [vmem:[#allocation9 + $0x8] sm:$0xff]
    %v513 = vld [vmem:[#allocation9 + $0x10] sm:$0xff]
    %v514 = vld [vmem:[#allocation9 + $0x18] sm:$0xff]
    %v515 = vld [vmem:[%s5] sm:$0x1]
    %517 = vrot.lane.b32.xlu0 %v510, 32
    %v518 = vpop.permute.xlu0 %517
    %v519 = vsel %vm129, %v518, 0
    %521 = vmatpush.msra.mxu0 0.0
    %522 = vmatpush.msra.mxu0 0.0
    %523 = vmatpush.msra.mxu0 0.0
    %524 = vmatpush.msra.mxu0 0.0
    %525 = vmatpush.msra.mxu0 0.0
    %526 = vmatpush.msra.mxu0 0.0
    %527 = vmatpush.msra.mxu0 0.0
    %528 = vmatpush.msra.mxu0 0.0
    %529 = vmatpush.msra.mxu0 0.0
    %530 = vmatpush.msra.mxu0 0.0
    %531 = vmatpush.msra.mxu0 0.0
    %532 = vmatpush.msra.mxu0 0.0
    %533 = vmatpush.msra.mxu0 %v514
    %534 = vmatpush.msra.mxu0 %v513
    %535 = vmatpush.msra.mxu0 %v512
    %536 = vmatpush.msra.mxu0 %v511
    %537 = vmatmul.f32.gmra.mxu0 %v519
    %v538 = vpop.f32.mrf.mxu0
    %v539 = vadd.f32 %v515, %v538
    %540 = vdwg.mxu0
    %541 = vst [vmem:[#allocation11] sm:$0x1] %v539
    // Predicated region
    $region42: #{lstm_forward.1} parent=1 // pred_check
      _
    $region43: #{lstm_forward.1} parent=1 // pred_check_branch
      %543 = sbr.rel (0) target = $region45
    $region44: #{lstm_forward.1} parent=1 // pred_region
      %545 = vsyncadd [#allocation5], 0
      %s547 = sshll.u32 [#allocation11], 4
      %s548 = int_to_ptr.vmem [resolvable:$true] %s547
      %s549 = sshll.u32 %s6, 4
      %s550 = int_to_ptr.hbm [resolvable:$true] %s549
      %552 = dma.vmem_to_hbm [thread:$0]  %s548, 16, %s550, [#allocation5]
    $region45: #{lstm_forward.1} parent=1 // pred_fallthru
      _
    // Predicated region
    $region46: #{lstm_forward.1} parent=1 // pred_check
      _
    $region47: #{lstm_forward.1} parent=1 // pred_check_branch
      %554 = sbr.rel (0) target = $region49
    $region48: #{lstm_forward.1} parent=1 // pred_region
      %556 = dma.done [#allocation5], 16
    $region49: #{lstm_forward.1} parent=1 // pred_fallthru
      _
    %557 = vsyncpa [#allocation4], 1
    %558 = vsyncpa [#allocation7], 1
    %559 = vsyncpa [#allocation10], 1
    %560 = vsyncpa [#allocation5], 1

</llo_original>
